<compile_context>
chip_gen: v7x
topology: tpu7x:2x2x1
jax: 0.10.0
libtpu: 0.0.40
codegen_flags: <defaults>
</compile_context>

<pallas_src>
import jax
import jax.numpy as jnp
from jax.experimental import pallas as pl
from jax.experimental.pallas import tpu as pltpu


_MIN_SPLIT_BYTES = 1 << 20  # only force a multi-block grid when the tensor is >= 1 MiB


def _ceil_div(a, b):
    return -(-a // b)


def _round_up(a, m):
    return _ceil_div(a, m) * m


def _noise_scale_kernel(x_ref, w_ref, o_ref):
    # x_ref: (BR, BC) tile of the 2-D noise view.
    # w_ref: (BR, 1) per-row scale OR (1, BC) per-lane scale (both f32).  The broadcast
    #        multiply runs on the VPU; promote-then-multiply matches PyTorch promotion.
    o_ref[...] = (x_ref[...].astype(jnp.float32) * w_ref[...]).astype(o_ref.dtype)


def noise_scaler(noise_nchw, weight_1c11, *, max_block_cols=2048,
                 ensure_multicore=None, in_place=False):
    """Pallas implementation of NoiseScaler.forward: noise * weight.

    noise_nchw:  (N, C, H, W)
    weight_1c11: (1, C, 1, 1) learned per-channel scale
    returns:     (N, C, H, W) in the promoted dtype (matches PyTorch promotion).
    """
    N, C, H, W = noise_nchw.shape
    spatial = H * W

    out_dtype = jnp.result_type(noise_nchw.dtype, weight_1c11.dtype)
    in_bpe = jnp.dtype(noise_nchw.dtype).itemsize
    out_bpe = jnp.dtype(out_dtype).itemsize
    row_bpe = in_bpe + out_bpe
    sub = 8 * max(1, 4 // in_bpe)  # native sublane packing: 8 (32-bit), 16 (bf16), 32 (int8)

    # ---- Generation-aware VMEM / parallelism policy --------------------------------
    try:
        phys_vmem = int(pltpu.get_tpu_info().vmem_capacity_bytes)
    except Exception:
        phys_vmem = 128 * 1024 * 1024
    is_v7x_class = phys_vmem <= 64 * 1024 * 1024
    if is_v7x_class:
        total_tile_budget = 28 * 1024 * 1024   # ~7 MiB per double-buffered data buffer
        vmem_limit = 44 * 1024 * 1024          # headroom under 64 MiB physical VMEM
    else:
        total_tile_budget = 16 * 1024 * 1024   # ~4 MiB per double-buffered data buffer
        vmem_limit = 32 * 1024 * 1024
    if ensure_multicore is None:
        ensure_multicore = is_v7x_class

    # ---- Layout selection ------------------------------------------------------------
    if spatial >= 128:
        # rows = batch*channel, lanes = spatial (lane-dense, unmasked stores)
        rows, cols = N * C, spatial
        x2d = noise_nchw.reshape(rows, cols)
        w2d = jnp.broadcast_to(
            weight_1c11.reshape(1, C).astype(jnp.float32), (N, C)).reshape(rows, 1)
        weight_on_rows = True
    else:
        # tiny feature maps: rows = batch, lanes = channel*spatial (keeps lanes dense)
        rows, cols = N, C * spatial
        x2d = noise_nchw.reshape(rows, cols)
        w2d = jnp.broadcast_to(
            weight_1c11.reshape(C, 1).astype(jnp.float32), (C, spatial)).reshape(1, cols)
        weight_on_rows = False

    # ---- Tile sizing (accounts for the 128-lane padding of the (br,1) weight buffer) ---
    if weight_on_rows:
        bc = cols if cols <= max_block_cols else max(128, (max_block_cols // 128) * 128)
        per_row_bytes = bc * row_bpe + 128 * 4           # x + out + padded weight column
        br_budget = max(sub, ((total_tile_budget // 2) // per_row_bytes) // sub * sub)
        br = rows if rows <= br_budget else br_budget
    else:
        # rows == batch is small; take the widest lane block that fits the budget.
        br = rows
        full_cost = 2 * (rows * cols * row_bpe + 8 * cols * 4)
        if full_cost <= total_tile_budget:
            bc = cols
        else:
            bc_budget = (total_tile_budget // 2) // (rows * row_bpe + 8 * 4)
            bc = max(128, min(cols, (bc_budget // 128) * 128))

    # ---- v7x megacore: ensure a 'parallel' axis has >=2 blocks for big tensors --------
    tensor_bytes = rows * cols * row_bpe
    if (ensure_multicore and tensor_bytes >= _MIN_SPLIT_BYTES
            and _ceil_div(rows, br) * _ceil_div(cols, bc) < 2):
        if rows > sub:
            br = _round_up(_ceil_div(rows, 2), sub)
        elif cols > 128:
            bc = _round_up(_ceil_div(cols, 2), 128)

    grid = (pl.cdiv(rows, br), pl.cdiv(cols, bc))

    if weight_on_rows:
        # Column index ignored -> weight tile only re-fetched once per row sweep.
        w_spec = pl.BlockSpec((br, 1), lambda i, j: (i, 0))
    else:
        w_spec = pl.BlockSpec((1, bc), lambda i, j: (0, j))

    aliases = {0: 0} if (in_place and out_dtype == noise_nchw.dtype) else {}

    out2d = pl.pallas_call(
        _noise_scale_kernel,
        out_shape=jax.ShapeDtypeStruct((rows, cols), out_dtype),
        grid_spec=pl.GridSpec(
            grid=grid,
            in_specs=[pl.BlockSpec((br, bc), lambda i, j: (i, j)), w_spec],
            out_specs=pl.BlockSpec((br, bc), lambda i, j: (i, j)),
        ),
        compiler_params=pltpu.CompilerParams(
            dimension_semantics=("parallel", "parallel"),
            vmem_limit_bytes=vmem_limit,
        ),
        cost_estimate=pl.CostEstimate(
            flops=rows * cols,
            transcendentals=0,
            bytes_accessed=rows * cols * row_bpe + int(w2d.size) * 4,
        ),
        input_output_aliases=aliases,
    )(x2d, w2d)

    return out2d.reshape(N, C, H, W)


if __name__ == "__main__":
    key = jax.random.PRNGKey(0)
    ks = jax.random.split(key, 8)

    # --- Test 1: typical aligned case (layout A, single block) ---
    N, C, H, W = 2, 4, 16, 16
    noise = jax.random.normal(ks[0], (N, C, H, W), dtype=jnp.float32)
    weight = jax.random.normal(ks[1], (1, C, 1, 1), dtype=jnp.float32)
    out = jax.block_until_ready(noise_scaler(noise, weight))
    ref = noise * weight
    assert out.shape == ref.shape and out.dtype == ref.dtype
    assert jnp.allclose(out, ref, atol=1e-6, rtol=1e-6)

    # --- Test 2: non-(8,128)-aligned rows & spatial (layout A, full-extent blocks) ---
    noise2 = jax.random.normal(ks[2], (2, 3, 14, 14), dtype=jnp.float32)
    weight2 = jax.random.normal(ks[3], (1, 3, 1, 1), dtype=jnp.float32)
    out2 = jax.block_until_ready(noise_scaler(noise2, weight2))
    assert jnp.allclose(out2, noise2 * weight2, atol=1e-6, rtol=1e-6)

    # --- Test 3: rows not a multiple of 8 while cols are tiled (block (6, 128)) ---
    noise3 = jax.random.normal(ks[4], (2, 3, 16, 16), dtype=jnp.float32)
    weight3 = jax.random.normal(ks[5], (1, 3, 1, 1), dtype=jnp.float32)
    out3 = jax.block_until_ready(noise_scaler(noise3, weight3, max_block_cols=128))
    assert jnp.allclose(out3, noise3 * weight3, atol=1e-6, rtol=1e-6)

    # --- Test 4: tiny early-StyleGAN feature map -> lane-dense (N, C*H*W) layout ---
    noise4 = jax.random.normal(ks[6], (2, 8, 4, 4), dtype=jnp.float32)
    weight4 = jax.random.normal(ks[7], (1, 8, 1, 1), dtype=jnp.float32)
    out4 = jax.block_until_ready(noise_scaler(noise4, weight4))
    assert jnp.allclose(out4, noise4 * weight4, atol=1e-6, rtol=1e-6)

    # --- Test 5: bf16 noise x f32 weight -> f32 (promote-then-multiply) ---
    noise5 = jax.random.normal(ks[0], (4, 8, 16, 16), dtype=jnp.bfloat16)
    weight5 = jax.random.normal(ks[1], (1, 8, 1, 1), dtype=jnp.float32)
    out5 = jax.block_until_ready(noise_scaler(noise5, weight5))
    assert out5.dtype == jnp.float32
    assert jnp.allclose(out5, noise5 * weight5, atol=1e-6, rtol=1e-6)

    # --- Test 6: force the v7x megacore split path (grid must get >= 2 blocks) ---
    noise6 = jax.random.normal(ks[2], (4, 128, 32, 32), dtype=jnp.float32)
    weight6 = jax.random.normal(ks[3], (1, 128, 1, 1), dtype=jnp.float32)
    out6 = jax.block_until_ready(noise_scaler(noise6, weight6, ensure_multicore=True))
    assert jnp.allclose(out6, noise6 * weight6, atol=1e-6, rtol=1e-6)

    print("KERNEL_OK")
</pallas_src>

<mosaic_0001>
module attributes {stable_mosaic.version = 11 : i64} {
  func.func @_noise_scale_kernel(%arg0: i32, %arg1: i32, %arg2: memref<8x256xf32, #tpu.memory_space<vmem>>, %arg3: memref<8x1xf32, #tpu.memory_space<vmem>>, %arg4: memref<8x256xf32, #tpu.memory_space<vmem>>) attributes {dimension_semantics = [#tpu.dimension_semantics<parallel>, #tpu.dimension_semantics<parallel>], iteration_bounds = array<i64: 1, 1>, scalar_prefetch = 0 : i64, scratch_operands = 0 : i64, tpu.core_type = #tpu.core_type<tc>, window_params = [{transform_indices = @transform_0, window_bounds = array<i64: 8, 256>}, {transform_indices = @transform_1, window_bounds = array<i64: 8, 1>}, {transform_indices = @transform_2, window_bounds = array<i64: 8, 256>}]} {
    %c0 = arith.constant 0 : index
    %c0_0 = arith.constant 0 : index
    %0 = vector.load %arg2[%c0, %c0_0] : memref<8x256xf32, #tpu.memory_space<vmem>>, vector<8x256xf32>
    %c0_1 = arith.constant 0 : index
    %c0_2 = arith.constant 0 : index
    %1 = vector.load %arg3[%c0_1, %c0_2] : memref<8x1xf32, #tpu.memory_space<vmem>>, vector<8x1xf32>
    %2 = vector.broadcast %1 : vector<8x1xf32> to vector<8x256xf32>
    %3 = arith.mulf %0, %2 : vector<8x256xf32>
    %c0_3 = arith.constant 0 : index
    %c0_4 = arith.constant 0 : index
    %4 = vector.load %arg4[%c0_3, %c0_4] : memref<8x256xf32, #tpu.memory_space<vmem>>, vector<8x256xf32>
    tpu.vector_store %arg4[%c0_3, %c0_4], %3 {strides = array<i32>} : memref<8x256xf32, #tpu.memory_space<vmem>>, vector<8x256xf32>,
    return
  }
  func.func @transform_0(%arg0: i32, %arg1: i32) -> (i32, i32) {
    %c0_i32 = arith.constant 0 : i32
    return %arg0, %arg1 : i32, i32
  }
  func.func @transform_1(%arg0: i32, %arg1: i32) -> (i32, i32) {
    %c0_i32 = arith.constant 0 : i32
    %c0_i32_0 = arith.constant 0 : i32
    return %arg0, %c0_i32 : i32, i32
  }
  func.func @transform_2(%arg0: i32, %arg1: i32) -> (i32, i32) {
    %c0_i32 = arith.constant 0 : i32
    return %arg0, %arg1 : i32, i32
  }
}

</mosaic_0001>

<llo_original>
// kernel: tpu_custom_call.1
$region0: #{tpu_custom_call.1}
  #allocation0 [shape = 'u32[]', space=smem, size = 0x4, offset = 0x4, fixed_abs, tag = 'smem constant byte address 0x4 - core index']
  #allocation1 [shape = 'u32[144,128]{1,0:T(1,128)}', space=vmem, size = 0x12000, scoped, tag = 'internal scratch']
  %s0 = inlined_call_operand.hbm [shape: f32[8,256], index: 0, kind: input, shape index: {}]
  %s1 = inlined_call_operand.vmem [shape: f32[8,1], index: 1, kind: input, shape index: {}]
  %s2 = inlined_call_operand.hbm [shape: f32[8,256], index: 2, kind: output, shape index: {}]
  %s3 = sld [smem:[#allocation0]]
  $region22: #{tpu_custom_call.1} parent=0
    _
  %s5 = ssub.s32 1, %s3
  %s6 = scalar_select 0, %s5, %s3
  $region1: #{tpu_custom_call.1} parent=0
    #allocation2 [shape = 'u8[8192]{0}', space=vmem, size = 0x2000, scoped, tag = 'input window, operand 0, single buffered']
    #allocation3 [shape = 's32[1]{0}', space=sflag, size = 0x4, scoped, tag = 'scoped memory for tpu_custom_call.1']
    #allocation4 [shape = 's32[1]{0}', space=sflag, size = 0x4, scoped, tag = 'scoped memory for tpu_custom_call.1']
    #allocation5 [shape = 'u8[8192]{0}', space=vmem, size = 0x2000, scoped, tag = 'output window, operand 0, single buffered']
    %7 = vsyncpa [#allocation3], 0
    %8 = vsyncpa [#allocation4], 0
    // Predicated region
    $region2: #{tpu_custom_call.1} parent=1 // pred_check
      _
    $region3: #{tpu_custom_call.1} parent=1 // pred_check_branch
      %10 = sbr.rel (0) target = $region5
    $region4: #{tpu_custom_call.1} parent=1 // pred_region
      %s12 = ssub.s32 256, 256
      %13 = vsyncadd [#allocation3], %s12
      %s15 = sshll.u32 [#allocation2], 4
      %s16 = int_to_ptr.vmem [resolvable:$true] %s15
      %18 = dma.hbm_to_vmem [thread:$0]  %s0, 256, %s16, [#allocation3]
    $region5: #{tpu_custom_call.1} parent=1 // pred_fallthru
      _
    // Predicated region
    $region6: #{tpu_custom_call.1} parent=1 // pred_check
      _
    $region7: #{tpu_custom_call.1} parent=1 // pred_check_branch
      %20 = sbr.rel (0) target = $region9
    $region8: #{tpu_custom_call.1} parent=1 // pred_region
      _
    $region9: #{tpu_custom_call.1} parent=1 // pred_fallthru
      _
    // Predicated region
    $region10: #{tpu_custom_call.1} parent=1 // pred_check
      _
    $region11: #{tpu_custom_call.1} parent=1 // pred_check_branch
      %22 = sbr.rel (0) target = $region13
    $region12: #{tpu_custom_call.1} parent=1 // pred_region
      %23 = dma.done [#allocation3], 256
    $region13: #{tpu_custom_call.1} parent=1 // pred_fallthru
      _
    %v24 = vld [vmem:[#allocation2] sm:$0xff]
    %v25 = vld [vmem:[#allocation2 + $0x8] sm:$0xff]
    %v26 = vld [vmem:[%s1] sm:$0xff]
    %28 = vset.pattern.permute.xlu0 0
    %29 = vperm.xlu0 %28, %v26
    %v30 = vpop.permute.xlu0 %29
    %v32 = vmul.f32 %v24, %v30
    %v33 = vmul.f32 %v25, %v30
    %34 = vst [vmem:[#allocation5] sm:$0xff] %v32
    %35 = vst [vmem:[#allocation5 + $0x8] sm:$0xff] %v33
    // Predicated region
    $region14: #{tpu_custom_call.1} parent=1 // pred_check
      _
    $region15: #{tpu_custom_call.1} parent=1 // pred_check_branch
      %37 = sbr.rel (0) target = $region17
    $region16: #{tpu_custom_call.1} parent=1 // pred_region
      %s39 = ssub.s32 256, 256
      %40 = vsyncadd [#allocation4], %s39
      %s42 = sshll.u32 [#allocation5], 4
      %s43 = int_to_ptr.vmem [resolvable:$true] %s42
      %45 = dma.vmem_to_hbm [thread:$0]  %s43, 256, %s2, [#allocation4]
    $region17: #{tpu_custom_call.1} parent=1 // pred_fallthru
      _
    // Predicated region
    $region18: #{tpu_custom_call.1} parent=1 // pred_check
      _
    $region19: #{tpu_custom_call.1} parent=1 // pred_check_branch
      %47 = sbr.rel (0) target = $region21
    $region20: #{tpu_custom_call.1} parent=1 // pred_region
      %48 = dma.done [#allocation4], 256
    $region21: #{tpu_custom_call.1} parent=1 // pred_fallthru
      _
    %49 = vsyncpa [#allocation3], 1
    %50 = vsyncpa [#allocation4], 1

</llo_original>
